<compile_context>
chip_gen: v6e
topology: v6e:2x2x1
jax: 0.10.0
libtpu: 0.0.40
codegen_flags: <defaults>
</compile_context>

<pallas_src>
import jax
import jax.numpy as jnp
from jax.experimental import pallas as pl
from jax.experimental.pallas import tpu as pltpu


def _round_up(x: int, m: int) -> int:
    return (x + m - 1) // m * m


def _patch_embed_kernel(x_ref, w_ref, b_ref, o_ref):
    # x_ref: (tm, Kp)   w_ref: (Kp, tn)   b_ref: (1, tn) f32   o_ref: (tm, tn)
    acc = jnp.dot(x_ref[...], w_ref[...], preferred_element_type=jnp.float32)
    o_ref[...] = (acc + b_ref[...]).astype(o_ref.dtype)


def patch_embed_matmul(patches, w_t, bias, *, out_dtype=None):
    """patches (M, K) @ w_t (K, N) + bias (N,) -> (M, N) on the MXU."""
    M, K = patches.shape
    K2, N = w_t.shape
    assert K == K2
    if out_dtype is None:
        out_dtype = patches.dtype

    x_bytes = jnp.dtype(patches.dtype).itemsize
    w_bytes = jnp.dtype(w_t.dtype).itemsize
    o_bytes = jnp.dtype(out_dtype).itemsize

    # Lane-aligned padded contraction / feature dims (exact: zero pads).
    Kp = _round_up(K, 128)
    Np = _round_up(N, 128)

    # ---- N tiling: keep the whole weight resident in VMEM when it fits -----
    _WEIGHT_VMEM_CAP = 16 * 1024 * 1024
    if Kp * Np * w_bytes <= _WEIGHT_VMEM_CAP:
        tn = Np
        n_invariant = True          # weight / bias DMA'd from HBM exactly once
    else:
        tn = next(t for t in (512, 256, 128) if Np % t == 0)
        n_invariant = False

    # ---- M tiling: largest tile whose working set fits a v7x-safe budget ---
    w_bufs = 1 if n_invariant else 2

    def _working_set(tm_):
        return (w_bufs * Kp * tn * w_bytes            # weight tile(s)
                + w_bufs * tn * 4                     # bias (f32)
                + 2 * tm_ * Kp * x_bytes              # patch tile, double-buffered
                + 2 * tm_ * tn * o_bytes)             # out tile, double-buffered

    _BUDGET = 32 * 1024 * 1024
    tm = 8
    for cand in (512, 256, 128, 64, 32, 16, 8):
        if _working_set(cand) <= _BUDGET:
            tm = cand
            break
    tm = min(tm, _round_up(M, 8))                     # never larger than needed

    vmem_limit = int(_working_set(tm) * 1.4) + (2 << 20)
    vmem_limit = max(min(vmem_limit, 48 * 1024 * 1024), 32 * 1024 * 1024)

    # ---- zero-pad K / N tails only when needed (exact) ----------------------
    # M is NOT padded: Pallas masks the partial last row block itself and
    # there is no reduction over M, so garbage rows are never written back.
    patches_p = patches if Kp == K else jnp.pad(patches, ((0, 0), (0, Kp - K)))
    w_p = w_t if (Kp, Np) == (K, N) else jnp.pad(w_t, ((0, Kp - K), (0, Np - N)))
    b_p = bias.reshape(1, N).astype(jnp.float32)
    if Np != N:
        b_p = jnp.pad(b_p, ((0, 0), (0, Np - N)))

    grid = (pl.cdiv(M, tm), Np // tn)

    if n_invariant:
        # Grid-invariant weight / bias: fetched once, single VMEM buffer.
        w_spec = pl.BlockSpec((Kp, tn), lambda i, j: (0, 0),
                              pipeline_mode=pl.Buffered(1))
        b_spec = pl.BlockSpec((1, tn), lambda i, j: (0, 0),
                              pipeline_mode=pl.Buffered(1))
    else:
        w_spec = pl.BlockSpec((Kp, tn), lambda i, j: (0, j))
        b_spec = pl.BlockSpec((1, tn), lambda i, j: (0, j))

    out = pl.pallas_call(
        _patch_embed_kernel,
        out_shape=jax.ShapeDtypeStruct((M, Np), out_dtype),
        grid_spec=pltpu.PrefetchScalarGridSpec(
            num_scalar_prefetch=0,
            grid=grid,
            in_specs=[
                pl.BlockSpec((tm, Kp), lambda i, j: (i, 0)),   # patch row tile
                w_spec,
                b_spec,
            ],
            out_specs=pl.BlockSpec((tm, tn), lambda i, j: (i, j)),
        ),
        compiler_params=pltpu.CompilerParams(
            # Independent M/N tiles -> megacore sharding on v7x (no-op v5e/v6e).
            dimension_semantics=("parallel", "parallel"),
            vmem_limit_bytes=vmem_limit,
        ),
        cost_estimate=pl.CostEstimate(
            flops=2 * M * Kp * Np,
            transcendentals=0,
            bytes_accessed=(x_bytes * M * Kp       # patches read once
                            + w_bytes * Kp * Np    # weight read once (invariant)
                            + o_bytes * M * Np     # output written once
                            + 4 * Np),             # bias
        ),
    )(patches_p, w_p, b_p)

    if Np != N:
        out = out[:, :N]
    return out


def patch_embed_forward(x, weight, bias, patch_size, *,
                        output_fmt="NCHW", dynamic_img_pad=False,
                        compute_dtype=jnp.bfloat16):
    """
    x:      (B, C, H, W)   NCHW, like the PyTorch module
    weight: (D, C, ph, pw) Conv2d weight
    bias:   (D,)           Conv2d bias
    compute_dtype: dtype fed to the MXU (bf16 default: native on v5e/v6e/v7x,
        halves HBM traffic; accumulation stays f32, bias add in f32).  Pass
        None to keep the input dtype (bit-faithful f32 path).
    Returns the embedding in `output_fmt` layout (module default NCHW).
    """
    ph, pw = patch_size
    B, C, H, W = x.shape
    D = weight.shape[0]
    out_dtype = x.dtype

    if dynamic_img_pad:
        pad_h = (-H) % ph
        pad_w = (-W) % pw
        if pad_h or pad_w:
            x = jnp.pad(x, ((0, 0), (0, 0), (0, pad_h), (0, pad_w)))
            H += pad_h
            W += pad_w

    gh, gw = H // ph, W // pw
    M = B * gh * gw
    K = C * ph * pw

    # im2col patch extraction: (M, K) with K = C*ph*pw (conv weight layout).
    # TODO(synk): fuse this image-sized HBM pass into the kernel (see header).
    patches = x.reshape(B, C, gh, ph, gw, pw)
    patches = patches.transpose(0, 2, 4, 1, 3, 5)        # (B, gh, gw, C, ph, pw)
    patches = patches.reshape(M, K)

    w_t = weight.reshape(D, K).T                          # (K, D); folded by XLA
    if compute_dtype is not None:
        patches = patches.astype(compute_dtype)          # fuses with the transpose
        w_t = w_t.astype(compute_dtype)

    out = patch_embed_matmul(patches, w_t, bias, out_dtype=out_dtype)  # (M, D)

    out = out.reshape(B, gh, gw, D)                       # NHWC tokens (free)
    if output_fmt == "NCHW":
        # Module default; NOTE this transpose costs a full extra HBM pass —
        # prefer NLC/NHWC (free reshapes of the lane-dense (M, D) result).
        out = out.transpose(0, 3, 1, 2)
    elif output_fmt == "NHWC":
        pass
    elif output_fmt == "NLC":
        out = out.reshape(B, gh * gw, D)
    elif output_fmt == "NCL":
        out = out.reshape(B, gh * gw, D).transpose(0, 2, 1)
    else:
        raise ValueError(f"unknown output_fmt {output_fmt}")
    return out


if __name__ == "__main__":
    # Small config consistent with the module:
    #   img_size=16, patch_size=4, in_chans=4, embed_dim=32, norm_layer=None
    B, C, H, W = 2, 4, 16, 16
    patch = (4, 4)
    embed_dim = 32

    key = jax.random.PRNGKey(0)
    kx, kw, kb = jax.random.split(key, 3)
    x = jax.random.normal(kx, (B, C, H, W), dtype=jnp.float32)
    weight = jax.random.normal(kw, (embed_dim, C, patch[0], patch[1]),
                               dtype=jnp.float32) * 0.02
    bias = jax.random.normal(kb, (embed_dim,), dtype=jnp.float32) * 0.02

    gh, gw = H // patch[0], W // patch[1]

    def conv_ref(xv, wv, bv):
        y = jax.lax.conv_general_dilated(
            xv, wv, window_strides=patch, padding="VALID",
            dimension_numbers=("NCHW", "OIHW", "NCHW"),
            preferred_element_type=jnp.float32)
        return y + bv.reshape(1, embed_dim, 1, 1)

    # Default path: bf16 MXU inputs, f32 accumulation.
    fwd = jax.jit(lambda xv, wv, bv: patch_embed_forward(xv, wv, bv, patch))
    out = jax.block_until_ready(fwd(x, weight, bias))
    assert out.shape == (B, embed_dim, gh, gw)
    ref_bf16 = conv_ref(x.astype(jnp.bfloat16).astype(jnp.float32),
                        weight.astype(jnp.bfloat16).astype(jnp.float32), bias)
    assert jnp.allclose(out, ref_bf16, atol=2e-3, rtol=2e-3), (
        "bf16 path mismatch:", float(jnp.max(jnp.abs(out - ref_bf16))))

    # Bit-faithful f32 path against the f32 strided conv (same math as nn.Conv2d).
    fwd32 = jax.jit(lambda xv, wv, bv: patch_embed_forward(
        xv, wv, bv, patch, compute_dtype=None))
    out32 = jax.block_until_ready(fwd32(x, weight, bias))
    ref32 = conv_ref(x, weight, bias)
    assert jnp.allclose(out32, ref32, atol=1e-4, rtol=1e-4), (
        "f32 path mismatch:", float(jnp.max(jnp.abs(out32 - ref32))))

    print("KERNEL_OK")
</pallas_src>

<mosaic_0001>
module attributes {stable_mosaic.version = 11 : i64} {
  func.func @_patch_embed_kernel(%arg0: i32, %arg1: i32, %arg2: memref<32x128xbf16, #tpu.memory_space<vmem>>, %arg3: memref<128x128xbf16, #tpu.memory_space<vmem>>, %arg4: memref<1x128xf32, #tpu.memory_space<vmem>>, %arg5: memref<32x128xf32, #tpu.memory_space<vmem>>) attributes {dimension_semantics = [#tpu.dimension_semantics<parallel>, #tpu.dimension_semantics<parallel>], iteration_bounds = array<i64: 1, 1>, scalar_prefetch = 0 : i64, scratch_operands = 0 : i64, tpu.core_type = #tpu.core_type<tc>, window_params = [{transform_indices = @transform_0, window_bounds = array<i64: 32, 128>}, {pipeline_mode = #tpu.pipeline_mode<synchronous>, transform_indices = @transform_1, window_bounds = array<i64: 128, 128>}, {pipeline_mode = #tpu.pipeline_mode<synchronous>, transform_indices = @transform_2, window_bounds = array<i64: 1, 128>}, {transform_indices = @transform_3, window_bounds = array<i64: 32, 128>}]} {
    %c0 = arith.constant 0 : index
    %c0_0 = arith.constant 0 : index
    %0 = vector.load %arg2[%c0, %c0_0] : memref<32x128xbf16, #tpu.memory_space<vmem>>, vector<32x128xbf16>
    %c0_1 = arith.constant 0 : index
    %c0_2 = arith.constant 0 : index
    %1 = vector.load %arg3[%c0_1, %c0_2] : memref<128x128xbf16, #tpu.memory_space<vmem>>, vector<128x128xbf16>
    %cst = arith.constant dense<0.000000e+00> : vector<32x128xf32>
    %2 = tpu.matmul %0, %1, %cst {dimension_numbers = #tpu.dot_dimension_numbers<[1], [0], [0], [1], [0, 0, 1, 1], [], []>} : vector<32x128xbf16>, vector<128x128xbf16>, vector<32x128xf32> -> vector<32x128xf32>
    %c0_3 = arith.constant 0 : index
    %c0_4 = arith.constant 0 : index
    %3 = vector.load %arg4[%c0_3, %c0_4] : memref<1x128xf32, #tpu.memory_space<vmem>>, vector<1x128xf32>
    %4 = vector.broadcast %3 : vector<1x128xf32> to vector<32x128xf32>
    %5 = arith.addf %2, %4 : vector<32x128xf32>
    %c0_5 = arith.constant 0 : index
    %c0_6 = arith.constant 0 : index
    %6 = vector.load %arg5[%c0_5, %c0_6] : memref<32x128xf32, #tpu.memory_space<vmem>>, vector<32x128xf32>
    tpu.vector_store %arg5[%c0_5, %c0_6], %5 {strides = array<i32>} : memref<32x128xf32, #tpu.memory_space<vmem>>, vector<32x128xf32>,
    return
  }
  func.func @transform_0(%arg0: i32, %arg1: i32) -> (i32, i32) {
    %c0_i32 = arith.constant 0 : i32
    %c0_i32_0 = arith.constant 0 : i32
    return %arg0, %c0_i32 : i32, i32
  }
  func.func @transform_1(%arg0: i32, %arg1: i32) -> (i32, i32) {
    %c0_i32 = arith.constant 0 : i32
    %c0_i32_0 = arith.constant 0 : i32
    %c0_i32_1 = arith.constant 0 : i32
    return %c0_i32, %c0_i32_0 : i32, i32
  }
  func.func @transform_2(%arg0: i32, %arg1: i32) -> (i32, i32) {
    %c0_i32 = arith.constant 0 : i32
    %c0_i32_0 = arith.constant 0 : i32
    %c0_i32_1 = arith.constant 0 : i32
    return %c0_i32, %c0_i32_0 : i32, i32
  }
  func.func @transform_3(%arg0: i32, %arg1: i32) -> (i32, i32) {
    %c0_i32 = arith.constant 0 : i32
    return %arg0, %arg1 : i32, i32
  }
}

</mosaic_0001>

<llo_original>
// kernel: _lambda_.1
$region0: #{_lambda_.1}
  #allocation0 [shape = 'u32[]', space=smem, size = 0x4, offset = 0x4, fixed_abs, tag = 'smem constant byte address 0x4 - core index']
  #allocation1 [shape = 'u32[144,128]{1,0:T(1,128)}', space=vmem, size = 0x12000, scoped, tag = 'internal scratch']
  %s0 = inlined_call_operand.vmem [shape: bf16[32,128], index: 0, kind: input, shape index: {}]
  %s1 = inlined_call_operand.vmem [shape: bf16[128,128], index: 1, kind: input, shape index: {}]
  %s2 = inlined_call_operand.vmem [shape: f32[1,128], index: 2, kind: input, shape index: {}]
  %s3 = inlined_call_operand.hbm [shape: f32[32,128], index: 3, kind: output, shape index: {}]
  %s4 = sld [smem:[#allocation0]]
  $region22: #{_lambda_.1} parent=0
    _
  %s6 = ssub.s32 1, %s4
  %s7 = scalar_select 0, %s6, %s4
  $region1: #{_lambda_.1} parent=0
    #allocation2 [shape = 'u8[16384]{0}', space=vmem, size = 0x4000, scoped, tag = 'output window, operand 0, single buffered']
    #allocation3 [shape = 's32[1]{0}', space=sflag, size = 0x4, scoped, tag = 'scoped memory for _lambda_.1']
    %8 = vsyncpa [#allocation3], 0
    // Predicated region
    $region2: #{_lambda_.1} parent=1 // pred_check
      _
    $region3: #{_lambda_.1} parent=1 // pred_check_branch
      %10 = sbr.rel (0) target = $region5
    $region4: #{_lambda_.1} parent=1 // pred_region
      _
    $region5: #{_lambda_.1} parent=1 // pred_fallthru
      _
    // Predicated region
    $region6: #{_lambda_.1} parent=1 // pred_check
      _
    $region7: #{_lambda_.1} parent=1 // pred_check_branch
      %12 = sbr.rel (0) target = $region9
    $region8: #{_lambda_.1} parent=1 // pred_region
      _
    $region9: #{_lambda_.1} parent=1 // pred_fallthru
      _
    // Predicated region
    $region10: #{_lambda_.1} parent=1 // pred_check
      _
    $region11: #{_lambda_.1} parent=1 // pred_check_branch
      %14 = sbr.rel (0) target = $region13
    $region12: #{_lambda_.1} parent=1 // pred_region
      _
    $region13: #{_lambda_.1} parent=1 // pred_fallthru
      _
    %v16 = vld [vmem:[%s0] sm:$0xf]
    %v17 = vld [vmem:[%s0 + $0x4] sm:$0xf]
    %v18 = vld [vmem:[%s0 + $0x8] sm:$0xf]
    %v19 = vld [vmem:[%s0 + $0xc] sm:$0xf]
    %v20 = vld [vmem:[%s1] sm:$0xf]
    %v21 = vld [vmem:[%s1 + $0x4] sm:$0xf]
    %v22 = vld [vmem:[%s1 + $0x8] sm:$0xf]
    %v23 = vld [vmem:[%s1 + $0xc] sm:$0xf]
    %v24 = vld [vmem:[%s1 + $0x10] sm:$0xf]
    %v25 = vld [vmem:[%s1 + $0x14] sm:$0xf]
    %v26 = vld [vmem:[%s1 + $0x18] sm:$0xf]
    %v27 = vld [vmem:[%s1 + $0x1c] sm:$0xf]
    %v28 = vld [vmem:[%s1 + $0x20] sm:$0xf]
    %v29 = vld [vmem:[%s1 + $0x24] sm:$0xf]
    %v30 = vld [vmem:[%s1 + $0x28] sm:$0xf]
    %v31 = vld [vmem:[%s1 + $0x2c] sm:$0xf]
    %v32 = vld [vmem:[%s1 + $0x30] sm:$0xf]
    %v33 = vld [vmem:[%s1 + $0x34] sm:$0xf]
    %v34 = vld [vmem:[%s1 + $0x38] sm:$0xf]
    %v35 = vld [vmem:[%s1 + $0x3c] sm:$0xf]
    %v36 = vld [vmem:[%s2] sm:$0x1]
    %v38 = vlaneseq
    %v39 = vshrl.u32 %v38, 7
    %v40 = vsub.s32 0, %v39
    %v41 = vrot.slane %v36, %v40
    %v47 = vunpack.c.l.b16 %v16
    %v48 = vunpack.c.l.b16 %v17
    %v49 = vunpack.c.l.b16 %v18
    %v50 = vunpack.c.l.b16 %v19
    %v51 = vpack.c.b16 %v48, %v47
    %v52 = vpack.c.b16 %v50, %v49
    %v71 = vunpack.c.l.b16 %v20
    %v72 = vunpack.c.l.b16 %v21
    %v73 = vunpack.c.l.b16 %v22
    %v74 = vunpack.c.l.b16 %v23
    %v75 = vunpack.c.l.b16 %v24
    %v76 = vunpack.c.l.b16 %v25
    %v77 = vunpack.c.l.b16 %v26
    %v78 = vunpack.c.l.b16 %v27
    %v79 = vunpack.c.l.b16 %v28
    %v80 = vunpack.c.l.b16 %v29
    %v81 = vunpack.c.l.b16 %v30
    %v82 = vunpack.c.l.b16 %v31
    %v83 = vunpack.c.l.b16 %v32
    %v84 = vunpack.c.l.b16 %v33
    %v85 = vunpack.c.l.b16 %v34
    %v86 = vunpack.c.l.b16 %v35
    %v87 = vpack.c.b16 %v72, %v71
    %v88 = vpack.c.b16 %v74, %v73
    %v89 = vpack.c.b16 %v76, %v75
    %v90 = vpack.c.b16 %v78, %v77
    %v91 = vpack.c.b16 %v80, %v79
    %v92 = vpack.c.b16 %v82, %v81
    %v93 = vpack.c.b16 %v84, %v83
    %v94 = vpack.c.b16 %v86, %v85
    %103 = vmatprep.subr.bf16.mxu0 0
    %104 = vmatpush1.bf16.msra.mxu0 %v94
    %105 = vmatprep.subr.bf16.mxu0 0
    %106 = vmatpush1.bf16.msra.mxu0 %v93
    %107 = vmatprep.subr.bf16.mxu0 0
    %108 = vmatpush1.bf16.msra.mxu0 %v92
    %109 = vmatprep.subr.bf16.mxu0 0
    %110 = vmatpush1.bf16.msra.mxu0 %v91
    %111 = vmatprep.subr.bf16.mxu0 0
    %112 = vmatpush1.bf16.msra.mxu0 %v90
    %113 = vmatprep.subr.bf16.mxu0 0
    %114 = vmatpush1.bf16.msra.mxu0 %v89
    %115 = vmatprep.subr.bf16.mxu0 0
    %116 = vmatpush1.bf16.msra.mxu0 %v88
    %117 = vmatprep.subr.bf16.mxu0 0
    %118 = vmatpush1.bf16.msra.mxu0 %v87
    %119 = vmatprep.subr.bf16.mxu0 0
    %120 = vmatpush2.bf16.msra.mxu0 0
    %121 = vmatprep.subr.bf16.mxu0 0
    %122 = vmatpush2.bf16.msra.mxu0 0
    %123 = vmatprep.subr.bf16.mxu0 0
    %124 = vmatpush2.bf16.msra.mxu0 0
    %125 = vmatprep.subr.bf16.mxu0 0
    %126 = vmatpush2.bf16.msra.mxu0 0
    %127 = vmatprep.subr.bf16.mxu0 0
    %128 = vmatpush2.bf16.msra.mxu0 0
    %129 = vmatprep.subr.bf16.mxu0 0
    %130 = vmatpush2.bf16.msra.mxu0 0
    %131 = vmatprep.subr.bf16.mxu0 0
    %132 = vmatpush2.bf16.msra.mxu0 0
    %133 = vmatprep.subr.bf16.mxu0 0
    %134 = vmatpush2.bf16.msra.mxu0 0
    %135 = vmatprep.mubr.bf16.mxu0 0
    %136 = vmatmul.mubr.bf16.gmra.mxu0 %v51
    %v137 = vpop.f32.mrf.mxu0
    %v138 = vadd.f32 %v41, %v137
    %v139 = vpop.f32.mrf.mxu0
    %v140 = vpop.f32.mrf.mxu0
    %v141 = vadd.f32 %v41, %v140
    %v142 = vpop.f32.mrf.mxu0
    %143 = vmatprep.mubr.bf16.mxu0 0
    %144 = vmatmul.mubr.bf16.gmra.mxu0 %v52
    %v145 = vpop.f32.mrf.mxu0
    %v146 = vadd.f32 %v41, %v145
    %v147 = vpop.f32.mrf.mxu0
    %v148 = vpop.f32.mrf.mxu0
    %v149 = vadd.f32 %v41, %v148
    %v150 = vpop.f32.mrf.mxu0
    %151 = vdwg.mxu0
    %152 = vst [vmem:[#allocation2] sm:$0xff] %v138
    %153 = vst [vmem:[#allocation2 + $0x8] sm:$0xff] %v141
    %154 = vst [vmem:[#allocation2 + $0x10] sm:$0xff] %v146
    %155 = vst [vmem:[#allocation2 + $0x18] sm:$0xff] %v149
    // Predicated region
    $region14: #{_lambda_.1} parent=1 // pred_check
      _
    $region15: #{_lambda_.1} parent=1 // pred_check_branch
      %157 = sbr.rel (0) target = $region17
    $region16: #{_lambda_.1} parent=1 // pred_region
      %s159 = ssub.s32 512, 512
      %160 = vsyncadd [#allocation3], %s159
      %s161 = sshll.u32 [#allocation2], 4
      %s162 = int_to_ptr.vmem [resolvable:$true] %s161
      %167 = dma.vmem_to_hbm [thread:$0]  %s162, 512, %s3, [#allocation3], 128, 128, 8
    $region17: #{_lambda_.1} parent=1 // pred_fallthru
      _
    // Predicated region
    $region18: #{_lambda_.1} parent=1 // pred_check
      _
    $region19: #{_lambda_.1} parent=1 // pred_check_branch
      %169 = sbr.rel (0) target = $region21
    $region20: #{_lambda_.1} parent=1 // pred_region
      %170 = dma.done [#allocation3], 512
    $region21: #{_lambda_.1} parent=1 // pred_fallthru
      _
    %171 = vsyncpa [#allocation3], 1

</llo_original>
